<compile_context>
chip_gen: v5e
topology: v5e:2x2
jax: 0.10.0
libtpu: 0.0.40
codegen_flags: <defaults>
</compile_context>

<pallas_src>
import math

import jax
import jax.numpy as jnp
from jax import lax
from jax.experimental import pallas as pl
from jax.experimental.pallas import tpu as pltpu

LANE = 128
SUBLANE = 8


def _round_up(x, m):
    return ((x + m - 1) // m) * m


def critic_kernel(state_ref, action_ref,
                  w1s_ref, w1a_ref, w_hid_ref, b_hid_ref, w5t_ref, b5_ref,
                  o_ref):
    """One batch tile of the 5-layer MLP critic.

    state_ref:(TB,S) f32  action_ref:(TB,A) f32
    w1s:(S,HP) bf16  w1a:(A,HP) bf16  w_hid:(3,HP,HP) bf16  b_hid:(4,HP) f32
    w5t:(OUT,HP) bf16  b5:(OUT,1) f32  o_ref:(1,OUT,TB) f32
    """
    f32 = jnp.float32
    bf16 = jnp.bfloat16
    biases = b_hid_ref[...]                                   # (4, HP) f32

    # --- layer 1: split matmul replaces the concat (bf16 operands, f32 acc) ---
    h = jnp.dot(state_ref[...].astype(bf16), w1s_ref[...],
                preferred_element_type=f32)
    h = h + jnp.dot(action_ref[...].astype(bf16), w1a_ref[...],
                    preferred_element_type=f32)
    h = jnp.maximum(h + biases[0:1], 0.0)                     # f32 elementwise

    # --- layers 2..4: stacked (3, HP, HP) weights ---
    for i in range(3):
        h = jnp.dot(h.astype(bf16), w_hid_ref[i], preferred_element_type=f32)
        h = jnp.maximum(h + biases[i + 1:i + 2], 0.0)

    # --- layer 5 (no ReLU) as a lane-dense (OUT, TB) row block ---
    # Contract h's hidden (lane) dim against the single output column so the
    # batch dim lands in the lane axis of the output store.
    y = lax.dot_general(w5t_ref[...], h.astype(bf16),
                        dimension_numbers=(((1,), (1,)), ((), ())),
                        preferred_element_type=f32)           # (OUT, TB)
    o_ref[0] = (y + b5_ref[...]).astype(o_ref.dtype)


def critic_forward(state, action, params, *, batch_tile=4096):
    """params: list of 5 (W_t, b); W_t shape (in, out), b shape (out,)."""
    state = jnp.asarray(state, jnp.float32)
    action = jnp.asarray(action, jnp.float32)
    B, S = state.shape
    A = action.shape[1]
    (w1, b1), (w2, b2), (w3, b3), (w4, b4), (w5, b5) = params
    H = w1.shape[1]
    OUT = w5.shape[1]

    HP = _round_up(H, LANE)        # lane-padded hidden width

    def pad2(w, r, c):
        return jnp.pad(w, ((0, r - w.shape[0]), (0, c - w.shape[1])))

    # Split + pad layer-1 weight; pack the rest.  Weights cast to bf16 once.
    w1s = pad2(w1[:S], S, HP).astype(jnp.bfloat16)                    # (S, HP)
    w1a = pad2(w1[S:], A, HP).astype(jnp.bfloat16)                    # (A, HP)
    w_hid = jnp.stack([pad2(w, HP, HP) for w in (w2, w3, w4)]
                      ).astype(jnp.bfloat16)                          # (3,HP,HP)
    b_hid = jnp.stack([jnp.pad(b, (0, HP - H))
                       for b in (b1, b2, b3, b4)]).astype(jnp.float32)  # (4,HP)
    w5t = pad2(w5, HP, OUT).T.astype(jnp.bfloat16)                    # (OUT,HP)
    b5p = b5.astype(jnp.float32).reshape(OUT, 1)                      # (OUT,1)

    # Batch tiling: tile is a multiple of 8 sublanes; batch padded to a
    # multiple of the tile so every block is full-sized.
    bt = max(SUBLANE, (int(batch_tile) // SUBLANE) * SUBLANE)
    Bp8 = _round_up(B, SUBLANE)
    TB = min(bt, Bp8)
    # Keep >= 2 grid steps when the batch allows it (v7x: both TensorCores).
    if Bp8 >= 2 * SUBLANE:
        TB = min(TB, _round_up((Bp8 + 1) // 2, SUBLANE))
    Bp = _round_up(B, TB)
    if Bp != B:
        state_p = jnp.pad(state, ((0, Bp - B), (0, 0)))
        action_p = jnp.pad(action, ((0, Bp - B), (0, 0)))
    else:
        state_p, action_p = state, action
    n_tiles = Bp // TB

    flops = 2 * Bp * ((S + A) * HP + 3 * HP * HP + HP * OUT)
    bytes_accessed = (4 * Bp * (S + A)                      # f32 inputs
                      + 2 * ((S + A) * HP + 3 * HP * HP + HP * OUT)  # bf16 W
                      + 4 * (4 * HP + OUT)                  # f32 biases
                      + 4 * Bp * OUT)                       # f32 output

    def run(const_mode):
        def const_spec(shape, index_map):
            if const_mode is None:
                return pl.BlockSpec(shape, index_map)
            return pl.BlockSpec(shape, index_map, pipeline_mode=const_mode)

        in_specs = [
            pl.BlockSpec((TB, S), lambda i: (i, 0)),          # state tile
            pl.BlockSpec((TB, A), lambda i: (i, 0)),          # action tile
            const_spec((S, HP), lambda i: (0, 0)),            # W1_state
            const_spec((A, HP), lambda i: (0, 0)),            # W1_action
            const_spec((3, HP, HP), lambda i: (0, 0, 0)),     # W2..W4
            const_spec((4, HP), lambda i: (0, 0)),            # b1..b4
            const_spec((OUT, HP), lambda i: (0, 0)),          # W5^T
            const_spec((OUT, 1), lambda i: (0, 0)),           # b5
        ]
        out_specs = pl.BlockSpec((1, OUT, TB), lambda i: (i, 0, 0))

        return pl.pallas_call(
            critic_kernel,
            out_shape=jax.ShapeDtypeStruct((n_tiles, OUT, TB), jnp.float32),
            grid_spec=pltpu.PrefetchScalarGridSpec(
                num_scalar_prefetch=0,
                grid=(n_tiles,),
                in_specs=in_specs,
                out_specs=out_specs,
            ),
            compiler_params=pltpu.CompilerParams(
                dimension_semantics=("parallel",),
                vmem_limit_bytes=32 * 1024 * 1024,
            ),
            cost_estimate=pl.CostEstimate(
                flops=flops, transcendentals=0,
                bytes_accessed=bytes_accessed),
        )(state_p, action_p, w1s, w1a, w_hid, b_hid, w5t, b5p)

    try:
        out = run(pl.Buffered(1))      # constants: single-buffered (no re-DMA)
    except Exception:
        out = run(None)                # fallback: default double-buffering

    # (n_tiles, OUT, TB) -> (Bp, OUT) -> (B, OUT)
    return out.transpose(0, 2, 1).reshape(Bp, OUT)[:B]


def init_linear(key, in_features, out_features):
    """PyTorch nn.Linear default init: uniform(+/- 1/sqrt(fan_in))."""
    kw, kb = jax.random.split(key)
    bound = 1.0 / math.sqrt(in_features)
    # stored already transposed: (in, out)
    w_t = jax.random.uniform(kw, (in_features, out_features),
                             dtype=jnp.float32, minval=-bound, maxval=bound)
    b = jax.random.uniform(kb, (out_features,),
                           dtype=jnp.float32, minval=-bound, maxval=bound)
    return w_t, b


def reference_forward(state, action, params):
    x = jnp.concatenate([state, action], axis=1)
    for i, (w, b) in enumerate(params):
        x = x @ w + b
        if i < len(params) - 1:
            x = jnp.maximum(x, 0.0)
    return x


if __name__ == "__main__":
    # Small shapes consistent with the module's forward:
    #   state (B, state_dim), action (B, action_dim)
    #   input_size = state_dim + action_dim
    B = 8
    state_dim, action_dim = 24, 8
    input_size = state_dim + action_dim     # 32
    hidden_size = 32
    output_size = 1

    root = jax.random.PRNGKey(0)
    k_state, k_action, k1, k2, k3, k4, k5 = jax.random.split(root, 7)

    state = jax.random.normal(k_state, (B, state_dim), dtype=jnp.float32)
    action = jax.random.normal(k_action, (B, action_dim), dtype=jnp.float32)

    params = [
        init_linear(k1, input_size, hidden_size),
        init_linear(k2, hidden_size, hidden_size),
        init_linear(k3, hidden_size, hidden_size),
        init_linear(k4, hidden_size, hidden_size),
        init_linear(k5, hidden_size, output_size),
    ]

    out = critic_forward(state, action, params)
    out = jax.block_until_ready(out)

    ref = reference_forward(state, action, params)
    assert out.shape == (B, output_size), out.shape
    # bf16 matmul operands (f32 accumulation) -> slightly looser tolerance.
    max_err = float(jnp.max(jnp.abs(out - ref)))
    assert jnp.allclose(out, ref, atol=2e-2, rtol=2e-2), f"max err {max_err}"

    print("KERNEL_OK")
</pallas_src>

<mosaic_0001>
module attributes {stable_mosaic.version = 11 : i64} {
  func.func @critic_kernel(%arg0: i32, %arg1: memref<8x24xf32, #tpu.memory_space<vmem>>, %arg2: memref<8x8xf32, #tpu.memory_space<vmem>>, %arg3: memref<24x128xbf16, #tpu.memory_space<vmem>>, %arg4: memref<8x128xbf16, #tpu.memory_space<vmem>>, %arg5: memref<3x128x128xbf16, #tpu.memory_space<vmem>>, %arg6: memref<4x128xf32, #tpu.memory_space<vmem>>, %arg7: memref<1x128xbf16, #tpu.memory_space<vmem>>, %arg8: memref<1x1xf32, #tpu.memory_space<vmem>>, %arg9: memref<1x1x8xf32, #tpu.memory_space<vmem>>) attributes {dimension_semantics = [#tpu.dimension_semantics<parallel>], iteration_bounds = array<i64: 1>, scalar_prefetch = 0 : i64, scratch_operands = 0 : i64, tpu.core_type = #tpu.core_type<tc>, window_params = [{transform_indices = @transform_0, window_bounds = array<i64: 8, 24>}, {transform_indices = @transform_1, window_bounds = array<i64: 8, 8>}, {pipeline_mode = #tpu.pipeline_mode<synchronous>, transform_indices = @transform_2, window_bounds = array<i64: 24, 128>}, {pipeline_mode = #tpu.pipeline_mode<synchronous>, transform_indices = @transform_3, window_bounds = array<i64: 8, 128>}, {pipeline_mode = #tpu.pipeline_mode<synchronous>, transform_indices = @transform_4, window_bounds = array<i64: 3, 128, 128>}, {pipeline_mode = #tpu.pipeline_mode<synchronous>, transform_indices = @transform_5, window_bounds = array<i64: 4, 128>}, {pipeline_mode = #tpu.pipeline_mode<synchronous>, transform_indices = @transform_6, window_bounds = array<i64: 1, 128>}, {pipeline_mode = #tpu.pipeline_mode<synchronous>, transform_indices = @transform_7, window_bounds = array<i64: 1, 1>}, {transform_indices = @transform_8, window_bounds = array<i64: 1, 1, 8>}]} {
    %c0 = arith.constant 0 : index
    %c0_0 = arith.constant 0 : index
    %0 = vector.load %arg6[%c0, %c0_0] : memref<4x128xf32, #tpu.memory_space<vmem>>, vector<4x128xf32>
    %c0_1 = arith.constant 0 : index
    %c0_2 = arith.constant 0 : index
    %1 = vector.load %arg1[%c0_1, %c0_2] : memref<8x24xf32, #tpu.memory_space<vmem>>, vector<8x24xf32>
    %2 = arith.truncf %1 : vector<8x24xf32> to vector<8x24xbf16>
    %c0_3 = arith.constant 0 : index
    %c0_4 = arith.constant 0 : index
    %3 = vector.load %arg3[%c0_3, %c0_4] : memref<24x128xbf16, #tpu.memory_space<vmem>>, vector<24x128xbf16>
    %cst = arith.constant dense<0.000000e+00> : vector<8x128xf32>
    %4 = tpu.matmul %2, %3, %cst {dimension_numbers = #tpu.dot_dimension_numbers<[1], [0], [0], [1], [0, 0, 1, 1], [], []>} : vector<8x24xbf16>, vector<24x128xbf16>, vector<8x128xf32> -> vector<8x128xf32>
    %c0_5 = arith.constant 0 : index
    %c0_6 = arith.constant 0 : index
    %5 = vector.load %arg2[%c0_5, %c0_6] : memref<8x8xf32, #tpu.memory_space<vmem>>, vector<8x8xf32>
    %6 = arith.truncf %5 : vector<8x8xf32> to vector<8x8xbf16>
    %c0_7 = arith.constant 0 : index
    %c0_8 = arith.constant 0 : index
    %7 = vector.load %arg4[%c0_7, %c0_8] : memref<8x128xbf16, #tpu.memory_space<vmem>>, vector<8x128xbf16>
    %cst_9 = arith.constant dense<0.000000e+00> : vector<8x128xf32>
    %8 = tpu.matmul %6, %7, %cst_9 {dimension_numbers = #tpu.dot_dimension_numbers<[1], [0], [0], [1], [0, 0, 1, 1], [], []>} : vector<8x8xbf16>, vector<8x128xbf16>, vector<8x128xf32> -> vector<8x128xf32>
    %9 = arith.addf %4, %8 : vector<8x128xf32>
    %10 = vector.extract_strided_slice %0 {offsets = [0, 0], sizes = [1, 128], strides = [1, 1]} : vector<4x128xf32> to vector<1x128xf32>
    %11 = vector.broadcast %10 : vector<1x128xf32> to vector<8x128xf32>
    %12 = arith.addf %9, %11 : vector<8x128xf32>
    %cst_10 = arith.constant 0.000000e+00 : f32
    %13 = vector.broadcast %cst_10 : f32 to vector<8x128xf32>
    %14 = arith.maximumf %12, %13 : vector<8x128xf32>
    %15 = arith.truncf %14 : vector<8x128xf32> to vector<8x128xbf16>
    %c0_11 = arith.constant 0 : index
    %c0_12 = arith.constant 0 : index
    %c0_13 = arith.constant 0 : index
    %16 = vector.load %arg5[%c0_11, %c0_12, %c0_13] : memref<3x128x128xbf16, #tpu.memory_space<vmem>>, vector<1x128x128xbf16>
    %17 = vector.shape_cast %16 : vector<1x128x128xbf16> to vector<128x128xbf16>
    %cst_14 = arith.constant dense<0.000000e+00> : vector<8x128xf32>
    %18 = tpu.matmul %15, %17, %cst_14 {dimension_numbers = #tpu.dot_dimension_numbers<[1], [0], [0], [1], [0, 0, 1, 1], [], []>} : vector<8x128xbf16>, vector<128x128xbf16>, vector<8x128xf32> -> vector<8x128xf32>
    %19 = vector.extract_strided_slice %0 {offsets = [1, 0], sizes = [1, 128], strides = [1, 1]} : vector<4x128xf32> to vector<1x128xf32>
    %20 = vector.broadcast %19 : vector<1x128xf32> to vector<8x128xf32>
    %21 = arith.addf %18, %20 : vector<8x128xf32>
    %cst_15 = arith.constant 0.000000e+00 : f32
    %22 = vector.broadcast %cst_15 : f32 to vector<8x128xf32>
    %23 = arith.maximumf %21, %22 : vector<8x128xf32>
    %24 = arith.truncf %23 : vector<8x128xf32> to vector<8x128xbf16>
    %c1 = arith.constant 1 : index
    %c0_16 = arith.constant 0 : index
    %c0_17 = arith.constant 0 : index
    %25 = vector.load %arg5[%c1, %c0_16, %c0_17] : memref<3x128x128xbf16, #tpu.memory_space<vmem>>, vector<1x128x128xbf16>
    %26 = vector.shape_cast %25 : vector<1x128x128xbf16> to vector<128x128xbf16>
    %cst_18 = arith.constant dense<0.000000e+00> : vector<8x128xf32>
    %27 = tpu.matmul %24, %26, %cst_18 {dimension_numbers = #tpu.dot_dimension_numbers<[1], [0], [0], [1], [0, 0, 1, 1], [], []>} : vector<8x128xbf16>, vector<128x128xbf16>, vector<8x128xf32> -> vector<8x128xf32>
    %28 = vector.extract_strided_slice %0 {offsets = [2, 0], sizes = [1, 128], strides = [1, 1]} : vector<4x128xf32> to vector<1x128xf32>
    %29 = vector.broadcast %28 : vector<1x128xf32> to vector<8x128xf32>
    %30 = arith.addf %27, %29 : vector<8x128xf32>
    %cst_19 = arith.constant 0.000000e+00 : f32
    %31 = vector.broadcast %cst_19 : f32 to vector<8x128xf32>
    %32 = arith.maximumf %30, %31 : vector<8x128xf32>
    %33 = arith.truncf %32 : vector<8x128xf32> to vector<8x128xbf16>
    %c2 = arith.constant 2 : index
    %c0_20 = arith.constant 0 : index
    %c0_21 = arith.constant 0 : index
    %34 = vector.load %arg5[%c2, %c0_20, %c0_21] : memref<3x128x128xbf16, #tpu.memory_space<vmem>>, vector<1x128x128xbf16>
    %35 = vector.shape_cast %34 : vector<1x128x128xbf16> to vector<128x128xbf16>
    %cst_22 = arith.constant dense<0.000000e+00> : vector<8x128xf32>
    %36 = tpu.matmul %33, %35, %cst_22 {dimension_numbers = #tpu.dot_dimension_numbers<[1], [0], [0], [1], [0, 0, 1, 1], [], []>} : vector<8x128xbf16>, vector<128x128xbf16>, vector<8x128xf32> -> vector<8x128xf32>
    %37 = vector.extract_strided_slice %0 {offsets = [3, 0], sizes = [1, 128], strides = [1, 1]} : vector<4x128xf32> to vector<1x128xf32>
    %38 = vector.broadcast %37 : vector<1x128xf32> to vector<8x128xf32>
    %39 = arith.addf %36, %38 : vector<8x128xf32>
    %cst_23 = arith.constant 0.000000e+00 : f32
    %40 = vector.broadcast %cst_23 : f32 to vector<8x128xf32>
    %41 = arith.maximumf %39, %40 : vector<8x128xf32>
    %c0_24 = arith.constant 0 : index
    %c0_25 = arith.constant 0 : index
    %42 = vector.load %arg7[%c0_24, %c0_25] : memref<1x128xbf16, #tpu.memory_space<vmem>>, vector<1x128xbf16>
    %43 = arith.truncf %41 : vector<8x128xf32> to vector<8x128xbf16>
    %cst_26 = arith.constant dense<0.000000e+00> : vector<1x8xf32>
    %44 = tpu.matmul %42, %43, %cst_26 {dimension_numbers = #tpu.dot_dimension_numbers<[1], [1], [0], [0], [0, 0, 1, 0], [], []>} : vector<1x128xbf16>, vector<8x128xbf16>, vector<1x8xf32> -> vector<1x8xf32>
    %c0_27 = arith.constant 0 : index
    %c0_28 = arith.constant 0 : index
    %45 = vector.load %arg8[%c0_27, %c0_28] : memref<1x1xf32, #tpu.memory_space<vmem>>, vector<1x1xf32>
    %46 = vector.broadcast %45 : vector<1x1xf32> to vector<1x8xf32>
    %47 = arith.addf %44, %46 : vector<1x8xf32>
    %c0_29 = arith.constant 0 : index
    %c0_30 = arith.constant 0 : index
    %c0_31 = arith.constant 0 : index
    %48 = vector.load %arg9[%c0_29, %c0_30, %c0_31] : memref<1x1x8xf32, #tpu.memory_space<vmem>>, vector<1x1x8xf32>
    %49 = vector.shape_cast %48 : vector<1x1x8xf32> to vector<1x8xf32>
    %50 = vector.shape_cast %47 : vector<1x8xf32> to vector<1x1x8xf32>
    tpu.vector_store %arg9[%c0_29, %c0_30, %c0_31], %50 {strides = array<i32>} : memref<1x1x8xf32, #tpu.memory_space<vmem>>, vector<1x1x8xf32>,
    return
  }
  func.func @transform_0(%arg0: i32) -> (i32, i32) {
    %c0_i32 = arith.constant 0 : i32
    %c0_i32_0 = arith.constant 0 : i32
    return %arg0, %c0_i32 : i32, i32
  }
  func.func @transform_1(%arg0: i32) -> (i32, i32) {
    %c0_i32 = arith.constant 0 : i32
    %c0_i32_0 = arith.constant 0 : i32
    return %arg0, %c0_i32 : i32, i32
  }
  func.func @transform_2(%arg0: i32) -> (i32, i32) {
    %c0_i32 = arith.constant 0 : i32
    %c0_i32_0 = arith.constant 0 : i32
    %c0_i32_1 = arith.constant 0 : i32
    return %c0_i32, %c0_i32_0 : i32, i32
  }
  func.func @transform_3(%arg0: i32) -> (i32, i32) {
    %c0_i32 = arith.constant 0 : i32
    %c0_i32_0 = arith.constant 0 : i32
    %c0_i32_1 = arith.constant 0 : i32
    return %c0_i32, %c0_i32_0 : i32, i32
  }
  func.func @transform_4(%arg0: i32) -> (i32, i32, i32) {
    %c0_i32 = arith.constant 0 : i32
    %c0_i32_0 = arith.constant 0 : i32
    %c0_i32_1 = arith.constant 0 : i32
    %c0_i32_2 = arith.constant 0 : i32
    return %c0_i32, %c0_i32_0, %c0_i32_1 : i32, i32, i32
  }
  func.func @transform_5(%arg0: i32) -> (i32, i32) {
    %c0_i32 = arith.constant 0 : i32
    %c0_i32_0 = arith.constant 0 : i32
    %c0_i32_1 = arith.constant 0 : i32
    return %c0_i32, %c0_i32_0 : i32, i32
  }
  func.func @transform_6(%arg0: i32) -> (i32, i32) {
    %c0_i32 = arith.constant 0 : i32
    %c0_i32_0 = arith.constant 0 : i32
    %c0_i32_1 = arith.constant 0 : i32
    return %c0_i32, %c0_i32_0 : i32, i32
  }
  func.func @transform_7(%arg0: i32) -> (i32, i32) {
    %c0_i32 = arith.constant 0 : i32
    %c0_i32_0 = arith.constant 0 : i32
    %c0_i32_1 = arith.constant 0 : i32
    return %c0_i32, %c0_i32_0 : i32, i32
  }
  func.func @transform_8(%arg0: i32) -> (i32, i32, i32) {
    %c0_i32 = arith.constant 0 : i32
    %c0_i32_0 = arith.constant 0 : i32
    %c0_i32_1 = arith.constant 0 : i32
    return %arg0, %c0_i32, %c0_i32_0 : i32, i32, i32
  }
}

module attributes {stable_mosaic.version = 11 : i64} {
  func.func @critic_kernel(%arg0: i32, %arg1: memref<8x24xf32, #tpu.memory_space<vmem>>, %arg2: memref<8x8xf32, #tpu.memory_space<vmem>>, %arg3: memref<24x128xbf16, #tpu.memory_space<vmem>>, %arg4: memref<8x128xbf16, #tpu.memory_space<vmem>>, %arg5: memref<3x128x128xbf16, #tpu.memory_space<vmem>>, %arg6: memref<4x128xf32, #tpu.memory_space<vmem>>, %arg7: memref<1x128xbf16, #tpu.memory_space<vmem>>, %arg8: memref<1x1xf32, #tpu.memory_space<vmem>>, %arg9: memref<1x1x8xf32, #tpu.memory_space<vmem>>) attributes {dimension_semantics = [#tpu.dimension_semantics<parallel>], iteration_bounds = array<i64: 1>, scalar_prefetch = 0 : i64, scratch_operands = 0 : i64, tpu.core_type = #tpu.core_type<tc>, window_params = [{transform_indices = @transform_0, window_bounds = array<i64: 8, 24>}, {transform_indices = @transform_1, window_bounds = array<i64: 8, 8>}, {pipeline_mode = #tpu.pipeline_mode<synchronous>, transform_indices = @transform_2, window_bounds = array<i64: 24, 128>}, {pipeline_mode = #tpu.pipeline_mode<synchronous>, transform_indices = @transform_3, window_bounds = array<i64: 8, 128>}, {pipeline_mode = #tpu.pipeline_mode<synchronous>, transform_indices = @transform_4, window_bounds = array<i64: 3, 128, 128>}, {pipeline_mode = #tpu.pipeline_mode<synchronous>, transform_indices = @transform_5, window_bounds = array<i64: 4, 128>}, {pipeline_mode = #tpu.pipeline_mode<synchronous>, transform_indices = @transform_6, window_bounds = array<i64: 1, 128>}, {pipeline_mode = #tpu.pipeline_mode<synchronous>, transform_indices = @transform_7, window_bounds = array<i64: 1, 1>}, {transform_indices = @transform_8, window_bounds = array<i64: 1, 1, 8>}]} {
    %c0 = arith.constant 0 : index
    %c0_0 = arith.constant 0 : index
    %0 = vector.load %arg6[%c0, %c0_0] : memref<4x128xf32, #tpu.memory_space<vmem>>, vector<4x128xf32>
    %c0_1 = arith.constant 0 : index
    %c0_2 = arith.constant 0 : index
    %1 = vector.load %arg1[%c0_1, %c0_2] : memref<8x24xf32, #tpu.memory_space<vmem>>, vector<8x24xf32>
    %2 = arith.truncf %1 : vector<8x24xf32> to vector<8x24xbf16>
    %c0_3 = arith.constant 0 : index
    %c0_4 = arith.constant 0 : index
    %3 = vector.load %arg3[%c0_3, %c0_4] : memref<24x128xbf16, #tpu.memory_space<vmem>>, vector<24x128xbf16>
    %cst = arith.constant dense<0.000000e+00> : vector<8x128xf32>
    %4 = tpu.matmul %2, %3, %cst {dimension_numbers = #tpu.dot_dimension_numbers<[1], [0], [0], [1], [0, 0, 1, 1], [], []>} : vector<8x24xbf16>, vector<24x128xbf16>, vector<8x128xf32> -> vector<8x128xf32>
    %c0_5 = arith.constant 0 : index
    %c0_6 = arith.constant 0 : index
    %5 = vector.load %arg2[%c0_5, %c0_6] : memref<8x8xf32, #tpu.memory_space<vmem>>, vector<8x8xf32>
    %6 = arith.truncf %5 : vector<8x8xf32> to vector<8x8xbf16>
    %c0_7 = arith.constant 0 : index
    %c0_8 = arith.constant 0 : index
    %7 = vector.load %arg4[%c0_7, %c0_8] : memref<8x128xbf16, #tpu.memory_space<vmem>>, vector<8x128xbf16>
    %cst_9 = arith.constant dense<0.000000e+00> : vector<8x128xf32>
    %8 = tpu.matmul %6, %7, %cst_9 {dimension_numbers = #tpu.dot_dimension_numbers<[1], [0], [0], [1], [0, 0, 1, 1], [], []>} : vector<8x8xbf16>, vector<8x128xbf16>, vector<8x128xf32> -> vector<8x128xf32>
    %9 = arith.addf %4, %8 : vector<8x128xf32>
    %10 = vector.extract_strided_slice %0 {offsets = [0, 0], sizes = [1, 128], strides = [1, 1]} : vector<4x128xf32> to vector<1x128xf32>
    %11 = vector.broadcast %10 : vector<1x128xf32> to vector<8x128xf32>
    %12 = arith.addf %9, %11 : vector<8x128xf32>
    %cst_10 = arith.constant 0.000000e+00 : f32
    %13 = vector.broadcast %cst_10 : f32 to vector<8x128xf32>
    %14 = arith.maximumf %12, %13 : vector<8x128xf32>
    %15 = arith.truncf %14 : vector<8x128xf32> to vector<8x128xbf16>
    %c0_11 = arith.constant 0 : index
    %c0_12 = arith.constant 0 : index
    %c0_13 = arith.constant 0 : index
    %16 = vector.load %arg5[%c0_11, %c0_12, %c0_13] : memref<3x128x128xbf16, #tpu.memory_space<vmem>>, vector<1x128x128xbf16>
    %17 = vector.shape_cast %16 : vector<1x128x128xbf16> to vector<128x128xbf16>
    %cst_14 = arith.constant dense<0.000000e+00> : vector<8x128xf32>
    %18 = tpu.matmul %15, %17, %cst_14 {dimension_numbers = #tpu.dot_dimension_numbers<[1], [0], [0], [1], [0, 0, 1, 1], [], []>} : vector<8x128xbf16>, vector<128x128xbf16>, vector<8x128xf32> -> vector<8x128xf32>
    %19 = vector.extract_strided_slice %0 {offsets = [1, 0], sizes = [1, 128], strides = [1, 1]} : vector<4x128xf32> to vector<1x128xf32>
    %20 = vector.broadcast %19 : vector<1x128xf32> to vector<8x128xf32>
    %21 = arith.addf %18, %20 : vector<8x128xf32>
    %cst_15 = arith.constant 0.000000e+00 : f32
    %22 = vector.broadcast %cst_15 : f32 to vector<8x128xf32>
    %23 = arith.maximumf %21, %22 : vector<8x128xf32>
    %24 = arith.truncf %23 : vector<8x128xf32> to vector<8x128xbf16>
    %c1 = arith.constant 1 : index
    %c0_16 = arith.constant 0 : index
    %c0_17 = arith.constant 0 : index
    %25 = vector.load %arg5[%c1, %c0_16, %c0_17] : memref<3x128x128xbf16, #tpu.memory_space<vmem>>, vector<1x128x128xbf16>
    %26 = vector.shape_cast %25 : vector<1x128x128xbf16> to vector<128x128xbf16>
    %cst_18 = arith.constant dense<0.000000e+00> : vector<8x128xf32>
    %27 = tpu.matmul %24, %26, %cst_18 {dimension_numbers = #tpu.dot_dimension_numbers<[1], [0], [0], [1], [0, 0, 1, 1], [], []>} : vector<8x128xbf16>, vector<128x128xbf16>, vector<8x128xf32> -> vector<8x128xf32>
    %28 = vector.extract_strided_slice %0 {offsets = [2, 0], sizes = [1, 128], strides = [1, 1]} : vector<4x128xf32> to vector<1x128xf32>
    %29 = vector.broadcast %28 : vector<1x128xf32> to vector<8x128xf32>
    %30 = arith.addf %27, %29 : vector<8x128xf32>
    %cst_19 = arith.constant 0.000000e+00 : f32
    %31 = vector.broadcast %cst_19 : f32 to vector<8x128xf32>
    %32 = arith.maximumf %30, %31 : vector<8x128xf32>
    %33 = arith.truncf %32 : vector<8x128xf32> to vector<8x128xbf16>
    %c2 = arith.constant 2 : index
    %c0_20 = arith.constant 0 : index
    %c0_21 = arith.constant 0 : index
    %34 = vector.load %arg5[%c2, %c0_20, %c0_21] : memref<3x128x128xbf16, #tpu.memory_space<vmem>>, vector<1x128x128xbf16>
    %35 = vector.shape_cast %34 : vector<1x128x128xbf16> to vector<128x128xbf16>
    %cst_22 = arith.constant dense<0.000000e+00> : vector<8x128xf32>
    %36 = tpu.matmul %33, %35, %cst_22 {dimension_numbers = #tpu.dot_dimension_numbers<[1], [0], [0], [1], [0, 0, 1, 1], [], []>} : vector<8x128xbf16>, vector<128x128xbf16>, vector<8x128xf32> -> vector<8x128xf32>
    %37 = vector.extract_strided_slice %0 {offsets = [3, 0], sizes = [1, 128], strides = [1, 1]} : vector<4x128xf32> to vector<1x128xf32>
    %38 = vector.broadcast %37 : vector<1x128xf32> to vector<8x128xf32>
    %39 = arith.addf %36, %38 : vector<8x128xf32>
    %cst_23 = arith.constant 0.000000e+00 : f32
    %40 = vector.broadcast %cst_23 : f32 to vector<8x128xf32>
    %41 = arith.maximumf %39, %40 : vector<8x128xf32>
    %c0_24 = arith.constant 0 : index
    %c0_25 = arith.constant 0 : index
    %42 = vector.load %arg7[%c0_24, %c0_25] : memref<1x128xbf16, #tpu.memory_space<vmem>>, vector<1x128xbf16>
    %43 = arith.truncf %41 : vector<8x128xf32> to vector<8x128xbf16>
    %cst_26 = arith.constant dense<0.000000e+00> : vector<1x8xf32>
    %44 = tpu.matmul %42, %43, %cst_26 {dimension_numbers = #tpu.dot_dimension_numbers<[1], [1], [0], [0], [0, 0, 1, 0], [], []>} : vector<1x128xbf16>, vector<8x128xbf16>, vector<1x8xf32> -> vector<1x8xf32>
    %c0_27 = arith.constant 0 : index
    %c0_28 = arith.constant 0 : index
    %45 = vector.load %arg8[%c0_27, %c0_28] : memref<1x1xf32, #tpu.memory_space<vmem>>, vector<1x1xf32>
    %46 = vector.broadcast %45 : vector<1x1xf32> to vector<1x8xf32>
    %47 = arith.addf %44, %46 : vector<1x8xf32>
    %c0_29 = arith.constant 0 : index
    %c0_30 = arith.constant 0 : index
    %c0_31 = arith.constant 0 : index
    %48 = vector.load %arg9[%c0_29, %c0_30, %c0_31] : memref<1x1x8xf32, #tpu.memory_space<vmem>>, vector<1x1x8xf32>
    %49 = vector.shape_cast %48 : vector<1x1x8xf32> to vector<1x8xf32>
    %50 = vector.shape_cast %47 : vector<1x8xf32> to vector<1x1x8xf32>
    tpu.vector_store %arg9[%c0_29, %c0_30, %c0_31], %50 {strides = array<i32>} : memref<1x1x8xf32, #tpu.memory_space<vmem>>, vector<1x1x8xf32>,
    return
  }
  func.func @transform_0(%arg0: i32) -> (i32, i32) {
    %c0_i32 = arith.constant 0 : i32
    %c0_i32_0 = arith.constant 0 : i32
    return %arg0, %c0_i32 : i32, i32
  }
  func.func @transform_1(%arg0: i32) -> (i32, i32) {
    %c0_i32 = arith.constant 0 : i32
    %c0_i32_0 = arith.constant 0 : i32
    return %arg0, %c0_i32 : i32, i32
  }
  func.func @transform_2(%arg0: i32) -> (i32, i32) {
    %c0_i32 = arith.constant 0 : i32
    %c0_i32_0 = arith.constant 0 : i32
    %c0_i32_1 = arith.constant 0 : i32
    return %c0_i32, %c0_i32_0 : i32, i32
  }
  func.func @transform_3(%arg0: i32) -> (i32, i32) {
    %c0_i32 = arith.constant 0 : i32
    %c0_i32_0 = arith.constant 0 : i32
    %c0_i32_1 = arith.constant 0 : i32
    return %c0_i32, %c0_i32_0 : i32, i32
  }
  func.func @transform_4(%arg0: i32) -> (i32, i32, i32) {
    %c0_i32 = arith.constant 0 : i32
    %c0_i32_0 = arith.constant 0 : i32
    %c0_i32_1 = arith.constant 0 : i32
    %c0_i32_2 = arith.constant 0 : i32
    return %c0_i32, %c0_i32_0, %c0_i32_1 : i32, i32, i32
  }
  func.func @transform_5(%arg0: i32) -> (i32, i32) {
    %c0_i32 = arith.constant 0 : i32
    %c0_i32_0 = arith.constant 0 : i32
    %c0_i32_1 = arith.constant 0 : i32
    return %c0_i32, %c0_i32_0 : i32, i32
  }
  func.func @transform_6(%arg0: i32) -> (i32, i32) {
    %c0_i32 = arith.constant 0 : i32
    %c0_i32_0 = arith.constant 0 : i32
    %c0_i32_1 = arith.constant 0 : i32
    return %c0_i32, %c0_i32_0 : i32, i32
  }
  func.func @transform_7(%arg0: i32) -> (i32, i32) {
    %c0_i32 = arith.constant 0 : i32
    %c0_i32_0 = arith.constant 0 : i32
    %c0_i32_1 = arith.constant 0 : i32
    return %c0_i32, %c0_i32_0 : i32, i32
  }
  func.func @transform_8(%arg0: i32) -> (i32, i32, i32) {
    %c0_i32 = arith.constant 0 : i32
    %c0_i32_0 = arith.constant 0 : i32
    %c0_i32_1 = arith.constant 0 : i32
    return %arg0, %c0_i32, %c0_i32_0 : i32, i32, i32
  }
}

</mosaic_0001>

<llo_original>
// kernel: tpu_custom_call.1
$region0: #{tpu_custom_call.1}
  #allocation0 [shape = 'u32[]', space=smem, size = 0x4, offset = 0x4, fixed_abs, tag = 'smem constant byte address 0x4 - core index']
  #allocation1 [shape = 'u32[72,128]{1,0:T(1,128)}', space=vmem, size = 0x9000, scoped, tag = 'internal scratch']
  #allocation2 [shape = 'f32[1,1]{1,0:T(1,128)S(1)}', space=vmem, size = 0x200, scoped, tag = 'scoped memory for tpu_custom_call.1']
  %s0 = inlined_call_operand.hbm [shape: f32[8,24], index: 0, kind: input, shape index: {}]
  %s1 = inlined_call_operand.hbm [shape: f32[8,8], index: 1, kind: input, shape index: {}]
  %s2 = inlined_call_operand.hbm [shape: bf16[24,128], index: 2, kind: input, shape index: {}]
  %s3 = inlined_call_operand.vmem [shape: bf16[8,128], index: 3, kind: input, shape index: {}]
  %s4 = inlined_call_operand.hbm [shape: bf16[3,128,128], index: 4, kind: input, shape index: {}]
  %s5 = inlined_call_operand.hbm [shape: f32[4,128], index: 5, kind: input, shape index: {}]
  %s6 = inlined_call_operand.vmem [shape: bf16[1,128], index: 6, kind: input, shape index: {}]
  %s7 = inlined_call_operand.<no memory space> [shape: f32[1,1], index: 7, kind: input, shape index: {}]
  %s8 = inlined_call_operand.hbm [shape: f32[1,1,8], index: 8, kind: output, shape index: {}]
  %s9 = sld [smem:[#allocation0]]
  $region62: #{tpu_custom_call.1} parent=0
    _
  %s11 = ssub.s32 1, %s9
  %s12 = scalar_select 0, %s11, %s9
  %v13 = vstv %s7
  %14 = vst [vmem:[#allocation2] sm:$0x1] %v13
  $region1: #{tpu_custom_call.1} parent=0
    #allocation3 [shape = 'u8[4096]{0}', space=vmem, size = 0x1000, scoped, tag = 'input window, operand 0, single buffered']
    #allocation4 [shape = 's32[1]{0}', space=sflag, size = 0x4, scoped, tag = 'scoped memory for tpu_custom_call.1']
    #allocation5 [shape = 's32[1]{0}', space=sflag, size = 0x4, scoped, tag = 'scoped memory for tpu_custom_call.1']
    #allocation6 [shape = 'u8[4096]{0}', space=vmem, size = 0x1000, scoped, tag = 'input window, operand 1, single buffered']
    #allocation7 [shape = 's32[1]{0}', space=sflag, size = 0x4, scoped, tag = 'scoped memory for tpu_custom_call.1']
    #allocation8 [shape = 'u8[6144]{0}', space=vmem, size = 0x1800, scoped, tag = 'input window, operand 2, single buffered']
    #allocation9 [shape = 'u8[98304]{0}', space=vmem, size = 0x18000, scoped, tag = 'input window, operand 4, single buffered']
    #allocation10 [shape = 's32[1]{0}', space=sflag, size = 0x4, scoped, tag = 'scoped memory for tpu_custom_call.1']
    #allocation11 [shape = 'u8[2048]{0}', space=vmem, size = 0x800, scoped, tag = 'input window, operand 5, single buffered']
    #allocation12 [shape = 'u8[512]{0}', space=vmem, size = 0x400, scoped, tag = 'output window, operand 0, single buffered']
    %15 = vsyncpa [#allocation4], 0
    %16 = vsyncpa [#allocation7], 0
    %17 = vsyncpa [#allocation10], 0
    %18 = vsyncpa [#allocation5], 0
    // Predicated region
    $region2: #{tpu_custom_call.1} parent=1 // pred_check
      _
    $region3: #{tpu_custom_call.1} parent=1 // pred_check_branch
      %20 = sbr.rel (0) target = $region5
    $region4: #{tpu_custom_call.1} parent=1 // pred_region
      %22 = vsyncadd [#allocation4], 0
      %s24 = sshll.u32 %s0, 4
      %s25 = int_to_ptr.hbm [resolvable:$true] %s24
      %s26 = sshll.u32 [#allocation3], 4
      %s27 = int_to_ptr.vmem [resolvable:$true] %s26
      %29 = dma.hbm_to_vmem [thread:$0]  %s25, 128, %s27, [#allocation4]
    $region5: #{tpu_custom_call.1} parent=1 // pred_fallthru
      _
    // Predicated region
    $region6: #{tpu_custom_call.1} parent=1 // pred_check
      _
    $region7: #{tpu_custom_call.1} parent=1 // pred_check_branch
      %31 = sbr.rel (0) target = $region9
    $region8: #{tpu_custom_call.1} parent=1 // pred_region
      %33 = vsyncadd [#allocation7], 0
      %s35 = sshll.u32 %s1, 4
      %s36 = int_to_ptr.hbm [resolvable:$true] %s35
      %s37 = sshll.u32 [#allocation6], 4
      %s38 = int_to_ptr.vmem [resolvable:$true] %s37
      %40 = dma.hbm_to_vmem [thread:$0]  %s36, 128, %s38, [#allocation7]
    $region9: #{tpu_custom_call.1} parent=1 // pred_fallthru
      _
    // Predicated region
    $region10: #{tpu_custom_call.1} parent=1 // pred_check
      _
    $region11: #{tpu_custom_call.1} parent=1 // pred_check_branch
      %42 = sbr.rel (0) target = $region13
    $region12: #{tpu_custom_call.1} parent=1 // pred_region
      %44 = vsyncadd [#allocation7], 0
      %s45 = sshll.u32 %s2, 4
      %s46 = int_to_ptr.hbm [resolvable:$true] %s45
      %s47 = sshll.u32 [#allocation8], 4
      %s48 = int_to_ptr.vmem [resolvable:$true] %s47
      %53 = dma.hbm_to_vmem [thread:$0]  %s46, 192, %s48, [#allocation7], 64, 64, 4
    $region13: #{tpu_custom_call.1} parent=1 // pred_fallthru
      _
    // Predicated region
    $region14: #{tpu_custom_call.1} parent=1 // pred_check
      _
    $region15: #{tpu_custom_call.1} parent=1 // pred_check_branch
      %55 = sbr.rel (0) target = $region17
    $region16: #{tpu_custom_call.1} parent=1 // pred_region
      _
    $region17: #{tpu_custom_call.1} parent=1 // pred_fallthru
      _
    // Predicated region
    $region18: #{tpu_custom_call.1} parent=1 // pred_check
      _
    $region19: #{tpu_custom_call.1} parent=1 // pred_check_branch
      %57 = sbr.rel (0) target = $region21
    $region20: #{tpu_custom_call.1} parent=1 // pred_region
      %59 = vsyncadd [#allocation10], 0
      %s60 = sshll.u32 %s4, 4
      %s61 = int_to_ptr.hbm [resolvable:$true] %s60
      %s62 = sshll.u32 [#allocation9], 4
      %s63 = int_to_ptr.vmem [resolvable:$true] %s62
      %68 = dma.hbm_to_vmem [thread:$0]  %s61, 3072, %s63, [#allocation10], 64, 64, 4
    $region21: #{tpu_custom_call.1} parent=1 // pred_fallthru
      _
    // Predicated region
    $region22: #{tpu_custom_call.1} parent=1 // pred_check
      _
    $region23: #{tpu_custom_call.1} parent=1 // pred_check_branch
      %70 = sbr.rel (0) target = $region25
    $region24: #{tpu_custom_call.1} parent=1 // pred_region
      %72 = vsyncadd [#allocation10], 0
      %s74 = sshll.u32 %s5, 4
      %s75 = int_to_ptr.hbm [resolvable:$true] %s74
      %s76 = sshll.u32 [#allocation11], 4
      %s77 = int_to_ptr.vmem [resolvable:$true] %s76
      %79 = dma.hbm_to_vmem [thread:$0]  %s75, 64, %s77, [#allocation10]
    $region25: #{tpu_custom_call.1} parent=1 // pred_fallthru
      _
    // Predicated region
    $region26: #{tpu_custom_call.1} parent=1 // pred_check
      _
    $region27: #{tpu_custom_call.1} parent=1 // pred_check_branch
      %81 = sbr.rel (0) target = $region29
    $region28: #{tpu_custom_call.1} parent=1 // pred_region
      _
    $region29: #{tpu_custom_call.1} parent=1 // pred_fallthru
      _
    // Predicated region
    $region30: #{tpu_custom_call.1} parent=1 // pred_check
      _
    $region31: #{tpu_custom_call.1} parent=1 // pred_check_branch
      %83 = sbr.rel (0) target = $region33
    $region32: #{tpu_custom_call.1} parent=1 // pred_region
      _
    $region33: #{tpu_custom_call.1} parent=1 // pred_fallthru
      _
    // Predicated region
    $region34: #{tpu_custom_call.1} parent=1 // pred_check
      _
    $region35: #{tpu_custom_call.1} parent=1 // pred_check_branch
      %85 = sbr.rel (0) target = $region37
    $region36: #{tpu_custom_call.1} parent=1 // pred_region
      %87 = dma.done [#allocation4], 128
    $region37: #{tpu_custom_call.1} parent=1 // pred_fallthru
      _
    // Predicated region
    $region38: #{tpu_custom_call.1} parent=1 // pred_check
      _
    $region39: #{tpu_custom_call.1} parent=1 // pred_check_branch
      %89 = sbr.rel (0) target = $region41
    $region40: #{tpu_custom_call.1} parent=1 // pred_region
      %91 = dma.done [#allocation7], 128
    $region41: #{tpu_custom_call.1} parent=1 // pred_fallthru
      _
    // Predicated region
    $region42: #{tpu_custom_call.1} parent=1 // pred_check
      _
    $region43: #{tpu_custom_call.1} parent=1 // pred_check_branch
      %93 = sbr.rel (0) target = $region45
    $region44: #{tpu_custom_call.1} parent=1 // pred_region
      %95 = dma.done [#allocation7], 192
    $region45: #{tpu_custom_call.1} parent=1 // pred_fallthru
      _
    // Predicated region
    $region46: #{tpu_custom_call.1} parent=1 // pred_check
      _
    $region47: #{tpu_custom_call.1} parent=1 // pred_check_branch
      %97 = sbr.rel (0) target = $region49
    $region48: #{tpu_custom_call.1} parent=1 // pred_region
      %99 = dma.done [#allocation10], 3072
    $region49: #{tpu_custom_call.1} parent=1 // pred_fallthru
      _
    // Predicated region
    $region50: #{tpu_custom_call.1} parent=1 // pred_check
      _
    $region51: #{tpu_custom_call.1} parent=1 // pred_check_branch
      %101 = sbr.rel (0) target = $region53
    $region52: #{tpu_custom_call.1} parent=1 // pred_region
      %103 = dma.done [#allocation10], 64
    $region53: #{tpu_custom_call.1} parent=1 // pred_fallthru
      _
    %v105 = vld [vmem:[#allocation11] sm:$0xf]
    %v106 = vld [vmem:[#allocation3] sm:$0xff]
    %v107 = vpack.c.bf16 %v106, %v106
    %v108 = vld [vmem:[#allocation8] sm:$0xf]
    %v109 = vld [vmem:[#allocation8 + $0x4] sm:$0xf]
    %v110 = vld [vmem:[#allocation8 + $0x8] sm:$0xf]
    %v111 = vld [vmem:[#allocation6] sm:$0xff]
    %v112 = vpack.c.bf16 %v111, %v111
    %v113 = vld [vmem:[%s3] sm:$0xf]
    %vm114 = vcmask 64512
    %v116 = vsel %vm114, %v112, 0
    %vm118 = vcmask 1043456
    %v120 = vsel %vm118, %v113, 0
    %122 = vmatpush.bf16.msra.mxu0 0
    %123 = vmatpush.bf16.msra.mxu0 0
    %124 = vmatpush.bf16.msra.mxu0 0
    %125 = vmatpush.bf16.msra.mxu0 0
    %126 = vmatpush.bf16.msra.mxu0 0
    %127 = vmatpush.bf16.msra.mxu0 0
    %128 = vmatpush.bf16.msra.mxu0 0
    %129 = vmatpush.bf16.msra.mxu0 %v120
    %130 = vmatmul.bf16.gmra.mxu0 %v116
    %v131 = vpop.f32.mrf.mxu0
    %v132 = vadd.f32 0.0, %v131
    %v133 = vpop.f32.mrf.mxu0
    %134 = vdwg.mxu0
    %v138 = vunpack.c.l.b16 %v108
    %v139 = vunpack.c.l.b16 %v109
    %v140 = vunpack.c.l.b16 %v110
    %v141 = vpack.c.b16 %v139, %v138
    %v142 = vpack.c.b16 %v140, %v140
    %vm144 = vcmask 195584
    %v146 = vsel %vm144, %v107, 0
    %v149 = vsel %vm118, %v142, 0
    %151 = vmatpush.bf16.msra.mxu0 0
    %152 = vmatpush.bf16.msra.mxu0 0
    %153 = vmatpush.bf16.msra.mxu0 0
    %154 = vmatpush.bf16.msra.mxu0 0
    %155 = vmatpush.bf16.msra.mxu0 0
    %156 = vmatpush.bf16.msra.mxu0 0
    %157 = vmatpush.bf16.msra.mxu0 %v149
    %158 = vmatpush.bf16.msra.mxu0 %v141
    %159 = vmatmul.bf16.gmra.mxu0 %v146
    %v160 = vpop.f32.mrf.mxu0
    %v161 = vadd.f32 %v132, %v160
    %v162 = vpop.f32.mrf.mxu0
    %163 = vdwg.mxu0
    %v164 = vperm.slane %v105, 0
    %v165 = vadd.f32 %v161, %v164
    %v166 = vmax.f32 %v165, 0.0
    %v167 = vpack.c.bf16 %v166, %v166
    %v168 = vld [vmem:[#allocation9] sm:$0xf]
    %v169 = vld [vmem:[#allocation9 + $0x4] sm:$0xf]
    %v170 = vld [vmem:[#allocation9 + $0x8] sm:$0xf]
    %v171 = vld [vmem:[#allocation9 + $0xc] sm:$0xf]
    %v172 = vld [vmem:[#allocation9 + $0x10] sm:$0xf]
    %v173 = vld [vmem:[#allocation9 + $0x14] sm:$0xf]
    %v174 = vld [vmem:[#allocation9 + $0x18] sm:$0xf]
    %v175 = vld [vmem:[#allocation9 + $0x1c] sm:$0xf]
    %v176 = vld [vmem:[#allocation9 + $0x20] sm:$0xf]
    %v177 = vld [vmem:[#allocation9 + $0x24] sm:$0xf]
    %v178 = vld [vmem:[#allocation9 + $0x28] sm:$0xf]
    %v179 = vld [vmem:[#allocation9 + $0x2c] sm:$0xf]
    %v180 = vld [vmem:[#allocation9 + $0x30] sm:$0xf]
    %v181 = vld [vmem:[#allocation9 + $0x34] sm:$0xf]
    %v182 = vld [vmem:[#allocation9 + $0x38] sm:$0xf]
    %v183 = vld [vmem:[#allocation9 + $0x3c] sm:$0xf]
    %v184 = vperm.slane %v105, 1
    %v201 = vunpack.c.l.b16 %v168
    %v202 = vunpack.c.l.b16 %v169
    %v203 = vunpack.c.l.b16 %v170
    %v204 = vunpack.c.l.b16 %v171
    %v205 = vunpack.c.l.b16 %v172
    %v206 = vunpack.c.l.b16 %v173
    %v207 = vunpack.c.l.b16 %v174
    %v208 = vunpack.c.l.b16 %v175
    %v209 = vunpack.c.l.b16 %v176
    %v210 = vunpack.c.l.b16 %v177
    %v211 = vunpack.c.l.b16 %v178
    %v212 = vunpack.c.l.b16 %v179
    %v213 = vunpack.c.l.b16 %v180
    %v214 = vunpack.c.l.b16 %v181
    %v215 = vunpack.c.l.b16 %v182
    %v216 = vunpack.c.l.b16 %v183
    %v217 = vpack.c.b16 %v202, %v201
    %v218 = vpack.c.b16 %v204, %v203
    %v219 = vpack.c.b16 %v206, %v205
    %v220 = vpack.c.b16 %v208, %v207
    %v221 = vpack.c.b16 %v210, %v209
    %v222 = vpack.c.b16 %v212, %v211
    %v223 = vpack.c.b16 %v214, %v213
    %v224 = vpack.c.b16 %v216, %v215
    %233 = vmatpush.bf16.msra.mxu0 %v224
    %234 = vmatpush.bf16.msra.mxu0 %v223
    %235 = vmatpush.bf16.msra.mxu0 %v222
    %236 = vmatpush.bf16.msra.mxu0 %v221
    %237 = vmatpush.bf16.msra.mxu0 %v220
    %238 = vmatpush.bf16.msra.mxu0 %v219
    %239 = vmatpush.bf16.msra.mxu0 %v218
    %240 = vmatpush.bf16.msra.mxu0 %v217
    %241 = vmatmul.bf16.gmra.mxu0 %v167
    %v242 = vpop.f32.mrf.mxu0
    %v243 = vadd.f32 %v184, %v242
    %v244 = vpop.f32.mrf.mxu0
    %245 = vdwg.mxu0
    %v246 = vmax.f32 %v243, 0.0
    %v247 = vpack.c.bf16 %v246, %v246
    %s248 = scalar_lea.vmem [#allocation9], 64
    %v249 = vld [vmem:[%s248] sm:$0xf]
    %v250 = vld [vmem:[%s248 + $0x4] sm:$0xf]
    %v251 = vld [vmem:[%s248 + $0x8] sm:$0xf]
    %v252 = vld [vmem:[%s248 + $0xc] sm:$0xf]
    %v253 = vld [vmem:[%s248 + $0x10] sm:$0xf]
    %v254 = vld [vmem:[%s248 + $0x14] sm:$0xf]
    %v255 = vld [vmem:[%s248 + $0x18] sm:$0xf]
    %v256 = vld [vmem:[%s248 + $0x1c] sm:$0xf]
    %v257 = vld [vmem:[%s248 + $0x20] sm:$0xf]
    %v258 = vld [vmem:[%s248 + $0x24] sm:$0xf]
    %v259 = vld [vmem:[%s248 + $0x28] sm:$0xf]
    %v260 = vld [vmem:[%s248 + $0x2c] sm:$0xf]
    %v261 = vld [vmem:[%s248 + $0x30] sm:$0xf]
    %v262 = vld [vmem:[%s248 + $0x34] sm:$0xf]
    %v263 = vld [vmem:[%s248 + $0x38] sm:$0xf]
    %v264 = vld [vmem:[%s248 + $0x3c] sm:$0xf]
    %v265 = vperm.slane %v105, 2
    %v282 = vunpack.c.l.b16 %v249
    %v283 = vunpack.c.l.b16 %v250
    %v284 = vunpack.c.l.b16 %v251
    %v285 = vunpack.c.l.b16 %v252
    %v286 = vunpack.c.l.b16 %v253
    %v287 = vunpack.c.l.b16 %v254
    %v288 = vunpack.c.l.b16 %v255
    %v289 = vunpack.c.l.b16 %v256
    %v290 = vunpack.c.l.b16 %v257
    %v291 = vunpack.c.l.b16 %v258
    %v292 = vunpack.c.l.b16 %v259
    %v293 = vunpack.c.l.b16 %v260
    %v294 = vunpack.c.l.b16 %v261
    %v295 = vunpack.c.l.b16 %v262
    %v296 = vunpack.c.l.b16 %v263
    %v297 = vunpack.c.l.b16 %v264
    %v298 = vpack.c.b16 %v283, %v282
    %v299 = vpack.c.b16 %v285, %v284
    %v300 = vpack.c.b16 %v287, %v286
    %v301 = vpack.c.b16 %v289, %v288
    %v302 = vpack.c.b16 %v291, %v290
    %v303 = vpack.c.b16 %v293, %v292
    %v304 = vpack.c.b16 %v295, %v294
    %v305 = vpack.c.b16 %v297, %v296
    %314 = vmatpush.bf16.msra.mxu0 %v305
    %315 = vmatpush.bf16.msra.mxu0 %v304
    %316 = vmatpush.bf16.msra.mxu0 %v303
    %317 = vmatpush.bf16.msra.mxu0 %v302
    %318 = vmatpush.bf16.msra.mxu0 %v301
    %319 = vmatpush.bf16.msra.mxu0 %v300
    %320 = vmatpush.bf16.msra.mxu0 %v299
    %321 = vmatpush.bf16.msra.mxu0 %v298
    %322 = vmatmul.bf16.gmra.mxu0 %v247
    %v323 = vpop.f32.mrf.mxu0
    %v324 = vadd.f32 %v265, %v323
    %v325 = vpop.f32.mrf.mxu0
    %326 = vdwg.mxu0
    %v327 = vmax.f32 %v324, 0.0
    %v328 = vpack.c.bf16 %v327, %v327
    %s329 = scalar_lea.vmem [#allocation9], 128
    %v330 = vld [vmem:[%s329] sm:$0xf]
    %v331 = vld [vmem:[%s329 + $0x4] sm:$0xf]
    %v332 = vld [vmem:[%s329 + $0x8] sm:$0xf]
    %v333 = vld [vmem:[%s329 + $0xc] sm:$0xf]
    %v334 = vld [vmem:[%s329 + $0x10] sm:$0xf]
    %v335 = vld [vmem:[%s329 + $0x14] sm:$0xf]
    %v336 = vld [vmem:[%s329 + $0x18] sm:$0xf]
    %v337 = vld [vmem:[%s329 + $0x1c] sm:$0xf]
    %v338 = vld [vmem:[%s329 + $0x20] sm:$0xf]
    %v339 = vld [vmem:[%s329 + $0x24] sm:$0xf]
    %v340 = vld [vmem:[%s329 + $0x28] sm:$0xf]
    %v341 = vld [vmem:[%s329 + $0x2c] sm:$0xf]
    %v342 = vld [vmem:[%s329 + $0x30] sm:$0xf]
    %v343 = vld [vmem:[%s329 + $0x34] sm:$0xf]
    %v344 = vld [vmem:[%s329 + $0x38] sm:$0xf]
    %v345 = vld [vmem:[%s329 + $0x3c] sm:$0xf]
    %v346 = vperm.slane %v105, 3
    %v363 = vunpack.c.l.b16 %v330
    %v364 = vunpack.c.l.b16 %v331
    %v365 = vunpack.c.l.b16 %v332
    %v366 = vunpack.c.l.b16 %v333
    %v367 = vunpack.c.l.b16 %v334
    %v368 = vunpack.c.l.b16 %v335
    %v369 = vunpack.c.l.b16 %v336
    %v370 = vunpack.c.l.b16 %v337
    %v371 = vunpack.c.l.b16 %v338
    %v372 = vunpack.c.l.b16 %v339
    %v373 = vunpack.c.l.b16 %v340
    %v374 = vunpack.c.l.b16 %v341
    %v375 = vunpack.c.l.b16 %v342
    %v376 = vunpack.c.l.b16 %v343
    %v377 = vunpack.c.l.b16 %v344
    %v378 = vunpack.c.l.b16 %v345
    %v379 = vpack.c.b16 %v364, %v363
    %v380 = vpack.c.b16 %v366, %v365
    %v381 = vpack.c.b16 %v368, %v367
    %v382 = vpack.c.b16 %v370, %v369
    %v383 = vpack.c.b16 %v372, %v371
    %v384 = vpack.c.b16 %v374, %v373
    %v385 = vpack.c.b16 %v376, %v375
    %v386 = vpack.c.b16 %v378, %v377
    %395 = vmatpush.bf16.msra.mxu0 %v386
    %396 = vmatpush.bf16.msra.mxu0 %v385
    %397 = vmatpush.bf16.msra.mxu0 %v384
    %398 = vmatpush.bf16.msra.mxu0 %v383
    %399 = vmatpush.bf16.msra.mxu0 %v382
    %400 = vmatpush.bf16.msra.mxu0 %v381
    %401 = vmatpush.bf16.msra.mxu0 %v380
    %402 = vmatpush.bf16.msra.mxu0 %v379
    %403 = vmatmul.bf16.gmra.mxu0 %v328
    %v404 = vpop.f32.mrf.mxu0
    %v405 = vadd.f32 %v346, %v404
    %v406 = vpop.f32.mrf.mxu0
    %407 = vdwg.mxu0
    %v408 = vmax.f32 %v405, 0.0
    %v409 = vld [vmem:[%s6] sm:$0x1]
    %v410 = vpack.c.bf16 %v408, %v408
    %v411 = vld [vmem:[#allocation2] sm:$0x1]
    %413 = vset.pattern.permute.xlu0 0
    %414 = vperm.xlu0 %413, %v411
    %v415 = vpop.permute.xlu0 %414
    %v417 = vperm.slane %v415, 0
    %418 = vmatpush.bf16.xpose.msra.mxu0 0
    %419 = vmatpush.bf16.xpose.msra.mxu0 0
    %420 = vmatpush.bf16.xpose.msra.mxu0 0
    %421 = vmatpush.bf16.xpose.msra.mxu0 0
    %422 = vmatpush.bf16.xpose.msra.mxu0 0
    %423 = vmatpush.bf16.xpose.msra.mxu0 0
    %424 = vmatpush.bf16.xpose.msra.mxu0 0
    %425 = vmatpush.bf16.xpose.msra.mxu0 %v410
    %426 = vmatmul.bf16.gmra.mxu0 %v409
    %v427 = vpop.f32.mrf.mxu0
    %v428 = vadd.f32 %v417, %v427
    %v429 = vpop.f32.mrf.mxu0
    %430 = vdwg.mxu0
    %vm431 = vcmask 57344
    %432 = vst.msk [vmem:[#allocation12] sm:$0x1] %vm431, %v428
    // Predicated region
    $region54: #{tpu_custom_call.1} parent=1 // pred_check
      _
    $region55: #{tpu_custom_call.1} parent=1 // pred_check_branch
      %434 = sbr.rel (0) target = $region57
    $region56: #{tpu_custom_call.1} parent=1 // pred_region
      %436 = vsyncadd [#allocation5], 0
      %s438 = sshll.u32 [#allocation12], 4
      %s439 = int_to_ptr.vmem [resolvable:$true] %s438
      %s440 = sshll.u32 %s8, 4
      %s441 = int_to_ptr.hbm [resolvable:$true] %s440
      %443 = dma.vmem_to_hbm [thread:$0]  %s439, 16, %s441, [#allocation5]
    $region57: #{tpu_custom_call.1} parent=1 // pred_fallthru
      _
    // Predicated region
    $region58: #{tpu_custom_call.1} parent=1 // pred_check
      _
    $region59: #{tpu_custom_call.1} parent=1 // pred_check_branch
      %445 = sbr.rel (0) target = $region61
    $region60: #{tpu_custom_call.1} parent=1 // pred_region
      %447 = dma.done [#allocation5], 16
    $region61: #{tpu_custom_call.1} parent=1 // pred_fallthru
      _
    %448 = vsyncpa [#allocation4], 1
    %449 = vsyncpa [#allocation7], 1
    %450 = vsyncpa [#allocation10], 1
    %451 = vsyncpa [#allocation5], 1

// kernel: tpu_custom_call.1
$region0: #{tpu_custom_call.1}
  #allocation0 [shape = 'u32[]', space=smem, size = 0x4, offset = 0x4, fixed_abs, tag = 'smem constant byte address 0x4 - core index']
  #allocation1 [shape = 'u32[72,128]{1,0:T(1,128)}', space=vmem, size = 0x9000, scoped, tag = 'internal scratch']
  #allocation2 [shape = 'f32[1,1]{1,0:T(1,128)S(1)}', space=vmem, size = 0x200, scoped, tag = 'scoped memory for tpu_custom_call.1']
  %s0 = inlined_call_operand.hbm [shape: f32[8,24], index: 0, kind: input, shape index: {}]
  %s1 = inlined_call_operand.hbm [shape: f32[8,8], index: 1, kind: input, shape index: {}]
  %s2 = inlined_call_operand.hbm [shape: bf16[24,128], index: 2, kind: input, shape index: {}]
  %s3 = inlined_call_operand.vmem [shape: bf16[8,128], index: 3, kind: input, shape index: {}]
  %s4 = inlined_call_operand.hbm [shape: bf16[3,128,128], index: 4, kind: input, shape index: {}]
  %s5 = inlined_call_operand.hbm [shape: f32[4,128], index: 5, kind: input, shape index: {}]
  %s6 = inlined_call_operand.vmem [shape: bf16[1,128], index: 6, kind: input, shape index: {}]
  %s7 = inlined_call_operand.<no memory space> [shape: f32[1,1], index: 7, kind: input, shape index: {}]
  %s8 = inlined_call_operand.hbm [shape: f32[1,1,8], index: 8, kind: output, shape index: {}]
  %s9 = sld [smem:[#allocation0]]
  $region62: #{tpu_custom_call.1} parent=0
    _
  %s11 = ssub.s32 1, %s9
  %s12 = scalar_select 0, %s11, %s9
  %v13 = vstv %s7
  %14 = vst [vmem:[#allocation2] sm:$0x1] %v13
  $region1: #{tpu_custom_call.1} parent=0
    #allocation3 [shape = 'u8[4096]{0}', space=vmem, size = 0x1000, scoped, tag = 'input window, operand 0, single buffered']
    #allocation4 [shape = 's32[1]{0}', space=sflag, size = 0x4, scoped, tag = 'scoped memory for tpu_custom_call.1']
    #allocation5 [shape = 's32[1]{0}', space=sflag, size = 0x4, scoped, tag = 'scoped memory for tpu_custom_call.1']
    #allocation6 [shape = 'u8[4096]{0}', space=vmem, size = 0x1000, scoped, tag = 'input window, operand 1, single buffered']
    #allocation7 [shape = 's32[1]{0}', space=sflag, size = 0x4, scoped, tag = 'scoped memory for tpu_custom_call.1']
    #allocation8 [shape = 'u8[6144]{0}', space=vmem, size = 0x1800, scoped, tag = 'input window, operand 2, single buffered']
    #allocation9 [shape = 'u8[98304]{0}', space=vmem, size = 0x18000, scoped, tag = 'input window, operand 4, single buffered']
    #allocation10 [shape = 's32[1]{0}', space=sflag, size = 0x4, scoped, tag = 'scoped memory for tpu_custom_call.1']
    #allocation11 [shape = 'u8[2048]{0}', space=vmem, size = 0x800, scoped, tag = 'input window, operand 5, single buffered']
    #allocation12 [shape = 'u8[512]{0}', space=vmem, size = 0x400, scoped, tag = 'output window, operand 0, single buffered']
    %15 = vsyncpa [#allocation4], 0
    %16 = vsyncpa [#allocation7], 0
    %17 = vsyncpa [#allocation10], 0
    %18 = vsyncpa [#allocation5], 0
    // Predicated region
    $region2: #{tpu_custom_call.1} parent=1 // pred_check
      _
    $region3: #{tpu_custom_call.1} parent=1 // pred_check_branch
      %20 = sbr.rel (0) target = $region5
    $region4: #{tpu_custom_call.1} parent=1 // pred_region
      %22 = vsyncadd [#allocation4], 0
      %s24 = sshll.u32 %s0, 4
      %s25 = int_to_ptr.hbm [resolvable:$true] %s24
      %s26 = sshll.u32 [#allocation3], 4
      %s27 = int_to_ptr.vmem [resolvable:$true] %s26
      %29 = dma.hbm_to_vmem [thread:$0]  %s25, 128, %s27, [#allocation4]
    $region5: #{tpu_custom_call.1} parent=1 // pred_fallthru
      _
    // Predicated region
    $region6: #{tpu_custom_call.1} parent=1 // pred_check
      _
    $region7: #{tpu_custom_call.1} parent=1 // pred_check_branch
      %31 = sbr.rel (0) target = $region9
    $region8: #{tpu_custom_call.1} parent=1 // pred_region
      %33 = vsyncadd [#allocation7], 0
      %s35 = sshll.u32 %s1, 4
      %s36 = int_to_ptr.hbm [resolvable:$true] %s35
      %s37 = sshll.u32 [#allocation6], 4
      %s38 = int_to_ptr.vmem [resolvable:$true] %s37
      %40 = dma.hbm_to_vmem [thread:$0]  %s36, 128, %s38, [#allocation7]
    $region9: #{tpu_custom_call.1} parent=1 // pred_fallthru
      _
    // Predicated region
    $region10: #{tpu_custom_call.1} parent=1 // pred_check
      _
    $region11: #{tpu_custom_call.1} parent=1 // pred_check_branch
      %42 = sbr.rel (0) target = $region13
    $region12: #{tpu_custom_call.1} parent=1 // pred_region
      %44 = vsyncadd [#allocation7], 0
      %s45 = sshll.u32 %s2, 4
      %s46 = int_to_ptr.hbm [resolvable:$true] %s45
      %s47 = sshll.u32 [#allocation8], 4
      %s48 = int_to_ptr.vmem [resolvable:$true] %s47
      %53 = dma.hbm_to_vmem [thread:$0]  %s46, 192, %s48, [#allocation7], 64, 64, 4
    $region13: #{tpu_custom_call.1} parent=1 // pred_fallthru
      _
    // Predicated region
    $region14: #{tpu_custom_call.1} parent=1 // pred_check
      _
    $region15: #{tpu_custom_call.1} parent=1 // pred_check_branch
      %55 = sbr.rel (0) target = $region17
    $region16: #{tpu_custom_call.1} parent=1 // pred_region
      _
    $region17: #{tpu_custom_call.1} parent=1 // pred_fallthru
      _
    // Predicated region
    $region18: #{tpu_custom_call.1} parent=1 // pred_check
      _
    $region19: #{tpu_custom_call.1} parent=1 // pred_check_branch
      %57 = sbr.rel (0) target = $region21
    $region20: #{tpu_custom_call.1} parent=1 // pred_region
      %59 = vsyncadd [#allocation10], 0
      %s60 = sshll.u32 %s4, 4
      %s61 = int_to_ptr.hbm [resolvable:$true] %s60
      %s62 = sshll.u32 [#allocation9], 4
      %s63 = int_to_ptr.vmem [resolvable:$true] %s62
      %68 = dma.hbm_to_vmem [thread:$0]  %s61, 3072, %s63, [#allocation10], 64, 64, 4
    $region21: #{tpu_custom_call.1} parent=1 // pred_fallthru
      _
    // Predicated region
    $region22: #{tpu_custom_call.1} parent=1 // pred_check
      _
    $region23: #{tpu_custom_call.1} parent=1 // pred_check_branch
      %70 = sbr.rel (0) target = $region25
    $region24: #{tpu_custom_call.1} parent=1 // pred_region
      %72 = vsyncadd [#allocation10], 0
      %s74 = sshll.u32 %s5, 4
      %s75 = int_to_ptr.hbm [resolvable:$true] %s74
      %s76 = sshll.u32 [#allocation11], 4
      %s77 = int_to_ptr.vmem [resolvable:$true] %s76
      %79 = dma.hbm_to_vmem [thread:$0]  %s75, 64, %s77, [#allocation10]
    $region25: #{tpu_custom_call.1} parent=1 // pred_fallthru
      _
    // Predicated region
    $region26: #{tpu_custom_call.1} parent=1 // pred_check
      _
    $region27: #{tpu_custom_call.1} parent=1 // pred_check_branch
      %81 = sbr.rel (0) target = $region29
    $region28: #{tpu_custom_call.1} parent=1 // pred_region
      _
    $region29: #{tpu_custom_call.1} parent=1 // pred_fallthru
      _
    // Predicated region
    $region30: #{tpu_custom_call.1} parent=1 // pred_check
      _
    $region31: #{tpu_custom_call.1} parent=1 // pred_check_branch
      %83 = sbr.rel (0) target = $region33
    $region32: #{tpu_custom_call.1} parent=1 // pred_region
      _
    $region33: #{tpu_custom_call.1} parent=1 // pred_fallthru
      _
    // Predicated region
    $region34: #{tpu_custom_call.1} parent=1 // pred_check
      _
    $region35: #{tpu_custom_call.1} parent=1 // pred_check_branch
      %85 = sbr.rel (0) target = $region37
    $region36: #{tpu_custom_call.1} parent=1 // pred_region
      %87 = dma.done [#allocation4], 128
    $region37: #{tpu_custom_call.1} parent=1 // pred_fallthru
      _
    // Predicated region
    $region38: #{tpu_custom_call.1} parent=1 // pred_check
      _
    $region39: #{tpu_custom_call.1} parent=1 // pred_check_branch
      %89 = sbr.rel (0) target = $region41
    $region40: #{tpu_custom_call.1} parent=1 // pred_region
      %91 = dma.done [#allocation7], 128
    $region41: #{tpu_custom_call.1} parent=1 // pred_fallthru
      _
    // Predicated region
    $region42: #{tpu_custom_call.1} parent=1 // pred_check
      _
    $region43: #{tpu_custom_call.1} parent=1 // pred_check_branch
      %93 = sbr.rel (0) target = $region45
    $region44: #{tpu_custom_call.1} parent=1 // pred_region
      %95 = dma.done [#allocation7], 192
    $region45: #{tpu_custom_call.1} parent=1 // pred_fallthru
      _
    // Predicated region
    $region46: #{tpu_custom_call.1} parent=1 // pred_check
      _
    $region47: #{tpu_custom_call.1} parent=1 // pred_check_branch
      %97 = sbr.rel (0) target = $region49
    $region48: #{tpu_custom_call.1} parent=1 // pred_region
      %99 = dma.done [#allocation10], 3072
    $region49: #{tpu_custom_call.1} parent=1 // pred_fallthru
      _
    // Predicated region
    $region50: #{tpu_custom_call.1} parent=1 // pred_check
      _
    $region51: #{tpu_custom_call.1} parent=1 // pred_check_branch
      %101 = sbr.rel (0) target = $region53
    $region52: #{tpu_custom_call.1} parent=1 // pred_region
      %103 = dma.done [#allocation10], 64
    $region53: #{tpu_custom_call.1} parent=1 // pred_fallthru
      _
    %v105 = vld [vmem:[#allocation11] sm:$0xf]
    %v106 = vld [vmem:[#allocation3] sm:$0xff]
    %v107 = vpack.c.bf16 %v106, %v106
    %v108 = vld [vmem:[#allocation8] sm:$0xf]
    %v109 = vld [vmem:[#allocation8 + $0x4] sm:$0xf]
    %v110 = vld [vmem:[#allocation8 + $0x8] sm:$0xf]
    %v111 = vld [vmem:[#allocation6] sm:$0xff]
    %v112 = vpack.c.bf16 %v111, %v111
    %v113 = vld [vmem:[%s3] sm:$0xf]
    %vm114 = vcmask 64512
    %v116 = vsel %vm114, %v112, 0
    %vm118 = vcmask 1043456
    %v120 = vsel %vm118, %v113, 0
    %122 = vmatpush.bf16.msra.mxu0 0
    %123 = vmatpush.bf16.msra.mxu0 0
    %124 = vmatpush.bf16.msra.mxu0 0
    %125 = vmatpush.bf16.msra.mxu0 0
    %126 = vmatpush.bf16.msra.mxu0 0
    %127 = vmatpush.bf16.msra.mxu0 0
    %128 = vmatpush.bf16.msra.mxu0 0
    %129 = vmatpush.bf16.msra.mxu0 %v120
    %130 = vmatmul.bf16.gmra.mxu0 %v116
    %v131 = vpop.f32.mrf.mxu0
    %v132 = vadd.f32 0.0, %v131
    %v133 = vpop.f32.mrf.mxu0
    %134 = vdwg.mxu0
    %v138 = vunpack.c.l.b16 %v108
    %v139 = vunpack.c.l.b16 %v109
    %v140 = vunpack.c.l.b16 %v110
    %v141 = vpack.c.b16 %v139, %v138
    %v142 = vpack.c.b16 %v140, %v140
    %vm144 = vcmask 195584
    %v146 = vsel %vm144, %v107, 0
    %v149 = vsel %vm118, %v142, 0
    %151 = vmatpush.bf16.msra.mxu0 0
    %152 = vmatpush.bf16.msra.mxu0 0
    %153 = vmatpush.bf16.msra.mxu0 0
    %154 = vmatpush.bf16.msra.mxu0 0
    %155 = vmatpush.bf16.msra.mxu0 0
    %156 = vmatpush.bf16.msra.mxu0 0
    %157 = vmatpush.bf16.msra.mxu0 %v149
    %158 = vmatpush.bf16.msra.mxu0 %v141
    %159 = vmatmul.bf16.gmra.mxu0 %v146
    %v160 = vpop.f32.mrf.mxu0
    %v161 = vadd.f32 %v132, %v160
    %v162 = vpop.f32.mrf.mxu0
    %163 = vdwg.mxu0
    %v164 = vperm.slane %v105, 0
    %v165 = vadd.f32 %v161, %v164
    %v166 = vmax.f32 %v165, 0.0
    %v167 = vpack.c.bf16 %v166, %v166
    %v168 = vld [vmem:[#allocation9] sm:$0xf]
    %v169 = vld [vmem:[#allocation9 + $0x4] sm:$0xf]
    %v170 = vld [vmem:[#allocation9 + $0x8] sm:$0xf]
    %v171 = vld [vmem:[#allocation9 + $0xc] sm:$0xf]
    %v172 = vld [vmem:[#allocation9 + $0x10] sm:$0xf]
    %v173 = vld [vmem:[#allocation9 + $0x14] sm:$0xf]
    %v174 = vld [vmem:[#allocation9 + $0x18] sm:$0xf]
    %v175 = vld [vmem:[#allocation9 + $0x1c] sm:$0xf]
    %v176 = vld [vmem:[#allocation9 + $0x20] sm:$0xf]
    %v177 = vld [vmem:[#allocation9 + $0x24] sm:$0xf]
    %v178 = vld [vmem:[#allocation9 + $0x28] sm:$0xf]
    %v179 = vld [vmem:[#allocation9 + $0x2c] sm:$0xf]
    %v180 = vld [vmem:[#allocation9 + $0x30] sm:$0xf]
    %v181 = vld [vmem:[#allocation9 + $0x34] sm:$0xf]
    %v182 = vld [vmem:[#allocation9 + $0x38] sm:$0xf]
    %v183 = vld [vmem:[#allocation9 + $0x3c] sm:$0xf]
    %v184 = vperm.slane %v105, 1
    %v201 = vunpack.c.l.b16 %v168
    %v202 = vunpack.c.l.b16 %v169
    %v203 = vunpack.c.l.b16 %v170
    %v204 = vunpack.c.l.b16 %v171
    %v205 = vunpack.c.l.b16 %v172
    %v206 = vunpack.c.l.b16 %v173
    %v207 = vunpack.c.l.b16 %v174
    %v208 = vunpack.c.l.b16 %v175
    %v209 = vunpack.c.l.b16 %v176
    %v210 = vunpack.c.l.b16 %v177
    %v211 = vunpack.c.l.b16 %v178
    %v212 = vunpack.c.l.b16 %v179
    %v213 = vunpack.c.l.b16 %v180
    %v214 = vunpack.c.l.b16 %v181
    %v215 = vunpack.c.l.b16 %v182
    %v216 = vunpack.c.l.b16 %v183
    %v217 = vpack.c.b16 %v202, %v201
    %v218 = vpack.c.b16 %v204, %v203
    %v219 = vpack.c.b16 %v206, %v205
    %v220 = vpack.c.b16 %v208, %v207
    %v221 = vpack.c.b16 %v210, %v209
    %v222 = vpack.c.b16 %v212, %v211
    %v223 = vpack.c.b16 %v214, %v213
    %v224 = vpack.c.b16 %v216, %v215
    %233 = vmatpush.bf16.msra.mxu0 %v224
    %234 = vmatpush.bf16.msra.mxu0 %v223
    %235 = vmatpush.bf16.msra.mxu0 %v222
    %236 = vmatpush.bf16.msra.mxu0 %v221
    %237 = vmatpush.bf16.msra.mxu0 %v220
    %238 = vmatpush.bf16.msra.mxu0 %v219
    %239 = vmatpush.bf16.msra.mxu0 %v218
    %240 = vmatpush.bf16.msra.mxu0 %v217
    %241 = vmatmul.bf16.gmra.mxu0 %v167
    %v242 = vpop.f32.mrf.mxu0
    %v243 = vadd.f32 %v184, %v242
    %v244 = vpop.f32.mrf.mxu0
    %245 = vdwg.mxu0
    %v246 = vmax.f32 %v243, 0.0
    %v247 = vpack.c.bf16 %v246, %v246
    %s248 = scalar_lea.vmem [#allocation9], 64
    %v249 = vld [vmem:[%s248] sm:$0xf]
    %v250 = vld [vmem:[%s248 + $0x4] sm:$0xf]
    %v251 = vld [vmem:[%s248 + $0x8] sm:$0xf]
    %v252 = vld [vmem:[%s248 + $0xc] sm:$0xf]
    %v253 = vld [vmem:[%s248 + $0x10] sm:$0xf]
    %v254 = vld [vmem:[%s248 + $0x14] sm:$0xf]
    %v255 = vld [vmem:[%s248 + $0x18] sm:$0xf]
    %v256 = vld [vmem:[%s248 + $0x1c] sm:$0xf]
    %v257 = vld [vmem:[%s248 + $0x20] sm:$0xf]
    %v258 = vld [vmem:[%s248 + $0x24] sm:$0xf]
    %v259 = vld [vmem:[%s248 + $0x28] sm:$0xf]
    %v260 = vld [vmem:[%s248 + $0x2c] sm:$0xf]
    %v261 = vld [vmem:[%s248 + $0x30] sm:$0xf]
    %v262 = vld [vmem:[%s248 + $0x34] sm:$0xf]
    %v263 = vld [vmem:[%s248 + $0x38] sm:$0xf]
    %v264 = vld [vmem:[%s248 + $0x3c] sm:$0xf]
    %v265 = vperm.slane %v105, 2
    %v282 = vunpack.c.l.b16 %v249
    %v283 = vunpack.c.l.b16 %v250
    %v284 = vunpack.c.l.b16 %v251
    %v285 = vunpack.c.l.b16 %v252
    %v286 = vunpack.c.l.b16 %v253
    %v287 = vunpack.c.l.b16 %v254
    %v288 = vunpack.c.l.b16 %v255
    %v289 = vunpack.c.l.b16 %v256
    %v290 = vunpack.c.l.b16 %v257
    %v291 = vunpack.c.l.b16 %v258
    %v292 = vunpack.c.l.b16 %v259
    %v293 = vunpack.c.l.b16 %v260
    %v294 = vunpack.c.l.b16 %v261
    %v295 = vunpack.c.l.b16 %v262
    %v296 = vunpack.c.l.b16 %v263
    %v297 = vunpack.c.l.b16 %v264
    %v298 = vpack.c.b16 %v283, %v282
    %v299 = vpack.c.b16 %v285, %v284
    %v300 = vpack.c.b16 %v287, %v286
    %v301 = vpack.c.b16 %v289, %v288
    %v302 = vpack.c.b16 %v291, %v290
    %v303 = vpack.c.b16 %v293, %v292
    %v304 = vpack.c.b16 %v295, %v294
    %v305 = vpack.c.b16 %v297, %v296
    %314 = vmatpush.bf16.msra.mxu0 %v305
    %315 = vmatpush.bf16.msra.mxu0 %v304
    %316 = vmatpush.bf16.msra.mxu0 %v303
    %317 = vmatpush.bf16.msra.mxu0 %v302
    %318 = vmatpush.bf16.msra.mxu0 %v301
    %319 = vmatpush.bf16.msra.mxu0 %v300
    %320 = vmatpush.bf16.msra.mxu0 %v299
    %321 = vmatpush.bf16.msra.mxu0 %v298
    %322 = vmatmul.bf16.gmra.mxu0 %v247
    %v323 = vpop.f32.mrf.mxu0
    %v324 = vadd.f32 %v265, %v323
    %v325 = vpop.f32.mrf.mxu0
    %326 = vdwg.mxu0
    %v327 = vmax.f32 %v324, 0.0
    %v328 = vpack.c.bf16 %v327, %v327
    %s329 = scalar_lea.vmem [#allocation9], 128
    %v330 = vld [vmem:[%s329] sm:$0xf]
    %v331 = vld [vmem:[%s329 + $0x4] sm:$0xf]
    %v332 = vld [vmem:[%s329 + $0x8] sm:$0xf]
    %v333 = vld [vmem:[%s329 + $0xc] sm:$0xf]
    %v334 = vld [vmem:[%s329 + $0x10] sm:$0xf]
    %v335 = vld [vmem:[%s329 + $0x14] sm:$0xf]
    %v336 = vld [vmem:[%s329 + $0x18] sm:$0xf]
    %v337 = vld [vmem:[%s329 + $0x1c] sm:$0xf]
    %v338 = vld [vmem:[%s329 + $0x20] sm:$0xf]
    %v339 = vld [vmem:[%s329 + $0x24] sm:$0xf]
    %v340 = vld [vmem:[%s329 + $0x28] sm:$0xf]
    %v341 = vld [vmem:[%s329 + $0x2c] sm:$0xf]
    %v342 = vld [vmem:[%s329 + $0x30] sm:$0xf]
    %v343 = vld [vmem:[%s329 + $0x34] sm:$0xf]
    %v344 = vld [vmem:[%s329 + $0x38] sm:$0xf]
    %v345 = vld [vmem:[%s329 + $0x3c] sm:$0xf]
    %v346 = vperm.slane %v105, 3
    %v363 = vunpack.c.l.b16 %v330
    %v364 = vunpack.c.l.b16 %v331
    %v365 = vunpack.c.l.b16 %v332
    %v366 = vunpack.c.l.b16 %v333
    %v367 = vunpack.c.l.b16 %v334
    %v368 = vunpack.c.l.b16 %v335
    %v369 = vunpack.c.l.b16 %v336
    %v370 = vunpack.c.l.b16 %v337
    %v371 = vunpack.c.l.b16 %v338
    %v372 = vunpack.c.l.b16 %v339
    %v373 = vunpack.c.l.b16 %v340
    %v374 = vunpack.c.l.b16 %v341
    %v375 = vunpack.c.l.b16 %v342
    %v376 = vunpack.c.l.b16 %v343
    %v377 = vunpack.c.l.b16 %v344
    %v378 = vunpack.c.l.b16 %v345
    %v379 = vpack.c.b16 %v364, %v363
    %v380 = vpack.c.b16 %v366, %v365
    %v381 = vpack.c.b16 %v368, %v367
    %v382 = vpack.c.b16 %v370, %v369
    %v383 = vpack.c.b16 %v372, %v371
    %v384 = vpack.c.b16 %v374, %v373
    %v385 = vpack.c.b16 %v376, %v375
    %v386 = vpack.c.b16 %v378, %v377
    %395 = vmatpush.bf16.msra.mxu0 %v386
    %396 = vmatpush.bf16.msra.mxu0 %v385
    %397 = vmatpush.bf16.msra.mxu0 %v384
    %398 = vmatpush.bf16.msra.mxu0 %v383
    %399 = vmatpush.bf16.msra.mxu0 %v382
    %400 = vmatpush.bf16.msra.mxu0 %v381
    %401 = vmatpush.bf16.msra.mxu0 %v380
    %402 = vmatpush.bf16.msra.mxu0 %v379
    %403 = vmatmul.bf16.gmra.mxu0 %v328
    %v404 = vpop.f32.mrf.mxu0
    %v405 = vadd.f32 %v346, %v404
    %v406 = vpop.f32.mrf.mxu0
    %407 = vdwg.mxu0
    %v408 = vmax.f32 %v405, 0.0
    %v409 = vld [vmem:[%s6] sm:$0x1]
    %v410 = vpack.c.bf16 %v408, %v408
    %v411 = vld [vmem:[#allocation2] sm:$0x1]
    %413 = vset.pattern.permute.xlu0 0
    %414 = vperm.xlu0 %413, %v411
    %v415 = vpop.permute.xlu0 %414
    %v417 = vperm.slane %v415, 0
    %418 = vmatpush.bf16.xpose.msra.mxu0 0
    %419 = vmatpush.bf16.xpose.msra.mxu0 0
    %420 = vmatpush.bf16.xpose.msra.mxu0 0
    %421 = vmatpush.bf16.xpose.msra.mxu0 0
    %422 = vmatpush.bf16.xpose.msra.mxu0 0
    %423 = vmatpush.bf16.xpose.msra.mxu0 0
    %424 = vmatpush.bf16.xpose.msra.mxu0 0
    %425 = vmatpush.bf16.xpose.msra.mxu0 %v410
    %426 = vmatmul.bf16.gmra.mxu0 %v409
    %v427 = vpop.f32.mrf.mxu0
    %v428 = vadd.f32 %v417, %v427
    %v429 = vpop.f32.mrf.mxu0
    %430 = vdwg.mxu0
    %vm431 = vcmask 57344
    %432 = vst.msk [vmem:[#allocation12] sm:$0x1] %vm431, %v428
    // Predicated region
    $region54: #{tpu_custom_call.1} parent=1 // pred_check
      _
    $region55: #{tpu_custom_call.1} parent=1 // pred_check_branch
      %434 = sbr.rel (0) target = $region57
    $region56: #{tpu_custom_call.1} parent=1 // pred_region
      %436 = vsyncadd [#allocation5], 0
      %s438 = sshll.u32 [#allocation12], 4
      %s439 = int_to_ptr.vmem [resolvable:$true] %s438
      %s440 = sshll.u32 %s8, 4
      %s441 = int_to_ptr.hbm [resolvable:$true] %s440
      %443 = dma.vmem_to_hbm [thread:$0]  %s439, 16, %s441, [#allocation5]
    $region57: #{tpu_custom_call.1} parent=1 // pred_fallthru
      _
    // Predicated region
    $region58: #{tpu_custom_call.1} parent=1 // pred_check
      _
    $region59: #{tpu_custom_call.1} parent=1 // pred_check_branch
      %445 = sbr.rel (0) target = $region61
    $region60: #{tpu_custom_call.1} parent=1 // pred_region
      %447 = dma.done [#allocation5], 16
    $region61: #{tpu_custom_call.1} parent=1 // pred_fallthru
      _
    %448 = vsyncpa [#allocation4], 1
    %449 = vsyncpa [#allocation7], 1
    %450 = vsyncpa [#allocation10], 1
    %451 = vsyncpa [#allocation5], 1

</llo_original>
